<compile_context>
chip_gen: v6e
topology: v6e:2x2x1
jax: 0.10.0
libtpu: 0.0.40
codegen_flags: <defaults>
</compile_context>

<pallas_src>
import functools
from typing import NamedTuple

import jax
import jax.numpy as jnp
from jax import lax
from jax.experimental import pallas as pl
from jax.experimental.pallas import tpu as pltpu


def _round_up(x: int, m: int) -> int:
    return ((x + m - 1) // m) * m


def _cdiv(a: int, b: int) -> int:
    return (a + b - 1) // b


# ----------------------------------------------------------------------------
# Kernels
# ----------------------------------------------------------------------------
def dqn_q_kernel(x_ref, w1_ref, b1_ref, w2_ref, b2_ref, out_ref):
    # x: (TB, n_obs) bf16   w1: (n_obs, 256) bf16   b1: (1, 256) f32
    # w2: (256, n_pad) bf16 b2: (1, n_pad) f32      out: (TB, n_pad)
    h = jnp.dot(x_ref[...], w1_ref[...], preferred_element_type=jnp.float32)
    h = jnp.maximum(h + b1_ref[...], 0.0)                      # bias + ReLU in f32
    y = jnp.dot(h.astype(w2_ref.dtype), w2_ref[...],
                preferred_element_type=jnp.float32)
    out_ref[...] = (y + b2_ref[...]).astype(out_ref.dtype)


def dqn_q_argmax_kernel(x_ref, w1_ref, b1_ref, w2_ref, b2_ref, out_ref, act_ref,
                        *, n_actions: int):
    h = jnp.dot(x_ref[...], w1_ref[...], preferred_element_type=jnp.float32)
    h = jnp.maximum(h + b1_ref[...], 0.0)
    y = jnp.dot(h.astype(w2_ref.dtype), w2_ref[...],
                preferred_element_type=jnp.float32)
    y = y + b2_ref[...]
    out_ref[...] = y.astype(out_ref.dtype)

    # Fused greedy argmax over action lanes (XLU reduce; padded lanes excluded).
    lane = lax.broadcasted_iota(jnp.int32, y.shape, 1)
    valid = lane < n_actions
    y_m = jnp.where(valid, y, -jnp.inf)
    m = jnp.max(y_m, axis=1, keepdims=True)
    idx = jnp.min(jnp.where((y_m == m) & valid, lane, y.shape[1]),
                  axis=1, keepdims=True)
    act_ref[...] = idx.astype(jnp.int32)


# ----------------------------------------------------------------------------
# Parameter prep (run once per parameter update, NOT per forward call)
# ----------------------------------------------------------------------------
class DQNParams(NamedTuple):
    w1: jax.Array       # (n_obs, hidden) bf16
    b1: jax.Array       # (1, hidden) f32
    w2: jax.Array       # (hidden, n_pad) bf16, zero-padded action lanes
    b2: jax.Array       # (1, n_pad) f32, zero-padded action lanes
    n_obs: int
    hidden: int
    n_actions: int


def prepare_params(w1, b1, w2, b2, compute_dtype=jnp.bfloat16) -> DQNParams:
    """Hoisted weight prep: lane-dense padding + bf16 casts, done once."""
    n_obs, hidden = w1.shape
    n_actions = w2.shape[1]
    n_pad = _round_up(n_actions, 128)

    w2p = jnp.zeros((hidden, n_pad), compute_dtype).at[:, :n_actions].set(
        w2.astype(compute_dtype))
    b2p = jnp.zeros((1, n_pad), jnp.float32).at[0, :n_actions].set(
        b2.astype(jnp.float32))
    return DQNParams(
        w1=w1.astype(compute_dtype),
        b1=b1.reshape(1, hidden).astype(jnp.float32),
        w2=w2p,
        b2=b2p,
        n_obs=n_obs,
        hidden=hidden,
        n_actions=n_actions,
    )


# ----------------------------------------------------------------------------
# Forward
# ----------------------------------------------------------------------------
def dqn_forward(state, params: DQNParams, *, block_b=1024, return_argmax=False,
                out_dtype=None):
    """Fused DQN forward.

    state: (B, n_obs) float; params: from prepare_params().
    Returns (B, n_actions) Q-values (and (B,) int32 greedy actions if
    return_argmax=True).
    """
    B, n_obs = state.shape
    assert n_obs == params.n_obs
    hidden = params.hidden
    n_pad = params.w2.shape[1]
    n_actions = params.n_actions
    out_dtype = state.dtype if out_dtype is None else out_dtype

    # --- batch tiling: bounded padding, 16-row (bf16 sublane-pack) aligned ---
    num_tiles = max(1, _cdiv(B, block_b))
    tile_b = _round_up(_cdiv(B, num_tiles), 16)
    b_pad = num_tiles * tile_b

    x = state.astype(params.w1.dtype)
    if b_pad != B:
        x = jnp.pad(x, ((0, b_pad - B), (0, 0)))

    in_specs = [
        pl.BlockSpec((tile_b, n_obs), lambda i: (i, 0)),   # x: tiled over batch
        pl.BlockSpec((n_obs, hidden), lambda i: (0, 0)),   # w1: VMEM-resident
        pl.BlockSpec((1, hidden),     lambda i: (0, 0)),   # b1
        pl.BlockSpec((hidden, n_pad), lambda i: (0, 0)),   # w2
        pl.BlockSpec((1, n_pad),      lambda i: (0, 0)),   # b2
    ]
    q_out_spec = pl.BlockSpec((tile_b, n_pad), lambda i: (i, 0))
    compiler_params = pltpu.CompilerParams(
        dimension_semantics=("parallel",),   # shard batch tiles across TCs (v7x)
    )

    if return_argmax:
        kernel = functools.partial(dqn_q_argmax_kernel, n_actions=n_actions)
        q, act = pl.pallas_call(
            kernel,
            out_shape=(jax.ShapeDtypeStruct((b_pad, n_pad), out_dtype),
                       jax.ShapeDtypeStruct((b_pad, 1), jnp.int32)),
            grid_spec=pl.GridSpec(
                grid=(num_tiles,),
                in_specs=in_specs,
                out_specs=(q_out_spec,
                           pl.BlockSpec((tile_b, 1), lambda i: (i, 0))),
            ),
            compiler_params=compiler_params,
        )(x, params.w1, params.b1, params.w2, params.b2)
        return q[:B, :n_actions], act[:B, 0]

    q = pl.pallas_call(
        dqn_q_kernel,
        out_shape=jax.ShapeDtypeStruct((b_pad, n_pad), out_dtype),
        grid_spec=pl.GridSpec(
            grid=(num_tiles,),
            in_specs=in_specs,
            out_specs=q_out_spec,
        ),
        compiler_params=compiler_params,
    )(x, params.w1, params.b1, params.w2, params.b2)
    return q[:B, :n_actions]


# ----------------------------------------------------------------------------
# Reference & init
# ----------------------------------------------------------------------------
def dqn_reference(state, w1, b1, w2, b2, compute_dtype=jnp.bfloat16):
    """Reference with the same bf16 quantization points as the kernel."""
    f32 = jnp.float32
    x = state.astype(compute_dtype).astype(f32)
    w1c = w1.astype(compute_dtype).astype(f32)
    w2c = w2.astype(compute_dtype).astype(f32)
    h = jnp.maximum(x @ w1c + b1.astype(f32), 0.0)
    h = h.astype(compute_dtype).astype(f32)
    return h @ w2c + b2.astype(f32)


def init_dqn_params(key, n_observations, n_actions, hidden=256):
    """PyTorch-style uniform(+-1/sqrt(fan_in)) init; weights stored (in, out)."""
    k1, k2, k3, k4 = jax.random.split(key, 4)
    bound1 = 1.0 / jnp.sqrt(jnp.float32(n_observations))
    bound2 = 1.0 / jnp.sqrt(jnp.float32(hidden))
    w1 = jax.random.uniform(k1, (n_observations, hidden), jnp.float32, -bound1, bound1)
    b1 = jax.random.uniform(k2, (hidden,), jnp.float32, -bound1, bound1)
    w2 = jax.random.uniform(k3, (hidden, n_actions), jnp.float32, -bound2, bound2)
    b2 = jax.random.uniform(k4, (n_actions,), jnp.float32, -bound2, bound2)
    return w1, b1, w2, b2


if __name__ == "__main__":
    key = jax.random.PRNGKey(0)
    k_params, k_small, k_big, k_odd = jax.random.split(key, 4)

    n_observations = 16
    n_actions = 4
    w1, b1, w2, b2 = init_dqn_params(k_params, n_observations, n_actions)
    params = prepare_params(w1, b1, w2, b2)   # one-time prep, out of the hot path

    # Act-path: tiny batch, fused greedy argmax, single grid step.
    state_small = jax.random.normal(k_small, (8, n_observations), jnp.float32)
    q_small, a_small = dqn_forward(state_small, params, return_argmax=True)
    jax.block_until_ready((q_small, a_small))
    ref_small = dqn_reference(state_small, w1, b1, w2, b2)
    assert q_small.shape == (8, n_actions)
    assert a_small.shape == (8,)
    assert jnp.allclose(q_small, ref_small, atol=2e-3, rtol=2e-3)
    # Kernel argmax must agree exactly with argmax of the kernel's own Q slab.
    assert jnp.array_equal(a_small, jnp.argmax(q_small, axis=1))

    # Replay-sized batch: single large tile (block_b=1024 default), VMEM-resident weights.
    state_big = jax.random.normal(k_big, (256, n_observations), jnp.float32)
    out_big = jax.block_until_ready(dqn_forward(state_big, params))
    ref_big = dqn_reference(state_big, w1, b1, w2, b2)
    assert out_big.shape == (256, n_actions)
    assert jnp.allclose(out_big, ref_big, atol=2e-3, rtol=2e-3)

    # Loose sanity check against full-f32 math (bf16 quantization bound).
    ref_f32 = jnp.maximum(state_big @ w1 + b1, 0.0) @ w2 + b2
    assert jnp.allclose(out_big, ref_f32, atol=5e-2, rtol=5e-2)

    # Awkward batch size: exercises the bounded-padding tile selection
    # (B=200, block_b=96 -> 3 tiles of 80 rows, only 40 padded rows total)
    # and the multi-tile "parallel" batch grid.
    state_odd = jax.random.normal(k_odd, (200, n_observations), jnp.float32)
    out_odd = jax.block_until_ready(dqn_forward(state_odd, params, block_b=96))
    ref_odd = dqn_reference(state_odd, w1, b1, w2, b2)
    assert out_odd.shape == (200, n_actions)
    assert jnp.allclose(out_odd, ref_odd, atol=2e-3, rtol=2e-3)

    print("KERNEL_OK")
</pallas_src>

<mosaic_0001>
module attributes {stable_mosaic.version = 11 : i64} {
  func.func @dqn_q_argmax_kernel(%arg0: i32, %arg1: memref<16x16xbf16, #tpu.memory_space<vmem>>, %arg2: memref<16x256xbf16, #tpu.memory_space<vmem>>, %arg3: memref<1x256xf32, #tpu.memory_space<vmem>>, %arg4: memref<256x128xbf16, #tpu.memory_space<vmem>>, %arg5: memref<1x128xf32, #tpu.memory_space<vmem>>, %arg6: memref<16x128xf32, #tpu.memory_space<vmem>>, %arg7: memref<16x1xi32, #tpu.memory_space<vmem>>) attributes {dimension_semantics = [#tpu.dimension_semantics<parallel>], iteration_bounds = array<i64: 1>, scalar_prefetch = 0 : i64, scratch_operands = 0 : i64, tpu.core_type = #tpu.core_type<tc>, window_params = [{transform_indices = @transform_0, window_bounds = array<i64: 16, 16>}, {pipeline_mode = #tpu.pipeline_mode<synchronous>, transform_indices = @transform_1, window_bounds = array<i64: 16, 256>}, {pipeline_mode = #tpu.pipeline_mode<synchronous>, transform_indices = @transform_2, window_bounds = array<i64: 1, 256>}, {pipeline_mode = #tpu.pipeline_mode<synchronous>, transform_indices = @transform_3, window_bounds = array<i64: 256, 128>}, {pipeline_mode = #tpu.pipeline_mode<synchronous>, transform_indices = @transform_4, window_bounds = array<i64: 1, 128>}, {transform_indices = @transform_5, window_bounds = array<i64: 16, 128>}, {transform_indices = @transform_6, window_bounds = array<i64: 16, 1>}]} {
    %c0 = arith.constant 0 : index
    %c0_0 = arith.constant 0 : index
    %0 = vector.load %arg1[%c0, %c0_0] : memref<16x16xbf16, #tpu.memory_space<vmem>>, vector<16x16xbf16>
    %c0_1 = arith.constant 0 : index
    %c0_2 = arith.constant 0 : index
    %1 = vector.load %arg2[%c0_1, %c0_2] : memref<16x256xbf16, #tpu.memory_space<vmem>>, vector<16x256xbf16>
    %cst = arith.constant dense<0.000000e+00> : vector<16x256xf32>
    %2 = tpu.matmul %0, %1, %cst {dimension_numbers = #tpu.dot_dimension_numbers<[1], [0], [0], [1], [0, 0, 1, 1], [], []>} : vector<16x16xbf16>, vector<16x256xbf16>, vector<16x256xf32> -> vector<16x256xf32>
    %c0_3 = arith.constant 0 : index
    %c0_4 = arith.constant 0 : index
    %3 = vector.load %arg3[%c0_3, %c0_4] : memref<1x256xf32, #tpu.memory_space<vmem>>, vector<1x256xf32>
    %4 = vector.broadcast %3 : vector<1x256xf32> to vector<16x256xf32>
    %5 = arith.addf %2, %4 : vector<16x256xf32>
    %cst_5 = arith.constant 0.000000e+00 : f32
    %6 = vector.broadcast %cst_5 : f32 to vector<16x256xf32>
    %7 = arith.maximumf %5, %6 : vector<16x256xf32>
    %8 = arith.truncf %7 : vector<16x256xf32> to vector<16x256xbf16>
    %c0_6 = arith.constant 0 : index
    %c0_7 = arith.constant 0 : index
    %9 = vector.load %arg4[%c0_6, %c0_7] : memref<256x128xbf16, #tpu.memory_space<vmem>>, vector<256x128xbf16>
    %cst_8 = arith.constant dense<0.000000e+00> : vector<16x128xf32>
    %10 = tpu.matmul %8, %9, %cst_8 {dimension_numbers = #tpu.dot_dimension_numbers<[1], [0], [0], [1], [0, 0, 1, 1], [], []>} : vector<16x256xbf16>, vector<256x128xbf16>, vector<16x128xf32> -> vector<16x128xf32>
    %c0_9 = arith.constant 0 : index
    %c0_10 = arith.constant 0 : index
    %11 = vector.load %arg5[%c0_9, %c0_10] : memref<1x128xf32, #tpu.memory_space<vmem>>, vector<1x128xf32>
    %12 = vector.broadcast %11 : vector<1x128xf32> to vector<16x128xf32>
    %13 = arith.addf %10, %12 : vector<16x128xf32>
    %c0_11 = arith.constant 0 : index
    %c0_12 = arith.constant 0 : index
    %14 = vector.load %arg6[%c0_11, %c0_12] : memref<16x128xf32, #tpu.memory_space<vmem>>, vector<16x128xf32>
    tpu.vector_store %arg6[%c0_11, %c0_12], %13 {strides = array<i32>} : memref<16x128xf32, #tpu.memory_space<vmem>>, vector<16x128xf32>,
    %15 = tpu.iota {dimensions = array<i32: 1>} : vector<16x128xi32>
    %c4_i32 = arith.constant 4 : i32
    %16 = vector.broadcast %c4_i32 : i32 to vector<16x128xi32>
    %17 = arith.cmpi slt, %15, %16 : vector<16x128xi32>
    %cst_13 = arith.constant 0xFF800000 : f32
    %18 = vector.broadcast %cst_13 : f32 to vector<16x128xf32>
    %19 = arith.select %17, %13, %18 : vector<16x128xi1>, vector<16x128xf32>
    %cst_14 = arith.constant dense<0xFF800000> : vector<16xf32>
    %20 = vector.multi_reduction <maximumf>, %19, %cst_14 [1] : vector<16x128xf32> to vector<16xf32>
    %21 = vector.shape_cast %20 : vector<16xf32> to vector<16x1xf32>
    %22 = vector.broadcast %21 : vector<16x1xf32> to vector<16x128xf32>
    %23 = arith.cmpf oeq, %19, %22 : vector<16x128xf32>
    %24 = arith.andi %23, %17 : vector<16x128xi1>
    %c128_i32 = arith.constant 128 : i32
    %25 = vector.broadcast %c128_i32 : i32 to vector<16x128xi32>
    %26 = arith.select %24, %15, %25 : vector<16x128xi1>, vector<16x128xi32>
    %cst_15 = arith.constant dense<2147483647> : vector<16xi32>
    %27 = vector.multi_reduction <minsi>, %26, %cst_15 [1] : vector<16x128xi32> to vector<16xi32>
    %28 = vector.shape_cast %27 : vector<16xi32> to vector<16x1xi32>
    %c0_16 = arith.constant 0 : index
    %c0_17 = arith.constant 0 : index
    %29 = vector.load %arg7[%c0_16, %c0_17] : memref<16x1xi32, #tpu.memory_space<vmem>>, vector<16x1xi32>
    tpu.vector_store %arg7[%c0_16, %c0_17], %28 {strides = array<i32>} : memref<16x1xi32, #tpu.memory_space<vmem>>, vector<16x1xi32>,
    return
  }
  func.func @transform_0(%arg0: i32) -> (i32, i32) {
    %c0_i32 = arith.constant 0 : i32
    %c0_i32_0 = arith.constant 0 : i32
    return %arg0, %c0_i32 : i32, i32
  }
  func.func @transform_1(%arg0: i32) -> (i32, i32) {
    %c0_i32 = arith.constant 0 : i32
    %c0_i32_0 = arith.constant 0 : i32
    %c0_i32_1 = arith.constant 0 : i32
    return %c0_i32, %c0_i32_0 : i32, i32
  }
  func.func @transform_2(%arg0: i32) -> (i32, i32) {
    %c0_i32 = arith.constant 0 : i32
    %c0_i32_0 = arith.constant 0 : i32
    %c0_i32_1 = arith.constant 0 : i32
    return %c0_i32, %c0_i32_0 : i32, i32
  }
  func.func @transform_3(%arg0: i32) -> (i32, i32) {
    %c0_i32 = arith.constant 0 : i32
    %c0_i32_0 = arith.constant 0 : i32
    %c0_i32_1 = arith.constant 0 : i32
    return %c0_i32, %c0_i32_0 : i32, i32
  }
  func.func @transform_4(%arg0: i32) -> (i32, i32) {
    %c0_i32 = arith.constant 0 : i32
    %c0_i32_0 = arith.constant 0 : i32
    %c0_i32_1 = arith.constant 0 : i32
    return %c0_i32, %c0_i32_0 : i32, i32
  }
  func.func @transform_5(%arg0: i32) -> (i32, i32) {
    %c0_i32 = arith.constant 0 : i32
    %c0_i32_0 = arith.constant 0 : i32
    return %arg0, %c0_i32 : i32, i32
  }
  func.func @transform_6(%arg0: i32) -> (i32, i32) {
    %c0_i32 = arith.constant 0 : i32
    %c0_i32_0 = arith.constant 0 : i32
    return %arg0, %c0_i32 : i32, i32
  }
}

</mosaic_0001>

<llo_original>
// kernel: tpu_custom_call.1
$region0: #{tpu_custom_call.1}
  #allocation0 [shape = 'u32[]', space=smem, size = 0x4, offset = 0x4, fixed_abs, tag = 'smem constant byte address 0x4 - core index']
  #allocation1 [shape = 'u32[144,128]{1,0:T(1,128)}', space=vmem, size = 0x12000, scoped, tag = 'internal scratch']
  %s0 = inlined_call_operand.hbm [shape: bf16[16,16], index: 0, kind: input, shape index: {}]
  %s1 = inlined_call_operand.hbm [shape: bf16[16,256], index: 1, kind: input, shape index: {}]
  %s2 = inlined_call_operand.vmem [shape: f32[1,256], index: 2, kind: input, shape index: {}]
  %s3 = inlined_call_operand.hbm [shape: bf16[256,128], index: 3, kind: input, shape index: {}]
  %s4 = inlined_call_operand.vmem [shape: f32[1,128], index: 4, kind: input, shape index: {}]
  %s5 = inlined_call_operand.hbm [shape: f32[16,128], index: 5, kind: output, shape index: {0}]
  %s6 = inlined_call_operand.vmem [shape: s32[16,1], index: 6, kind: output, shape index: {1}]
  %7 = xla_tuple %s5, %s6
  %s8 = sld [smem:[#allocation0]]
  $region50: #{tpu_custom_call.1} parent=0
    _
  %s10 = ssub.s32 1, %s8
  %s11 = scalar_select 0, %s10, %s8
  $region1: #{tpu_custom_call.1} parent=0
    #allocation2 [shape = 'u8[4096]{0}', space=vmem, size = 0x1000, scoped, tag = 'input window, operand 0, single buffered']
    #allocation3 [shape = 's32[1]{0}', space=sflag, size = 0x4, scoped, tag = 'scoped memory for tpu_custom_call.1']
    #allocation4 [shape = 's32[1]{0}', space=sflag, size = 0x4, scoped, tag = 'scoped memory for tpu_custom_call.1']
    #allocation5 [shape = 'u8[8192]{0}', space=vmem, size = 0x2000, scoped, tag = 'input window, operand 1, single buffered']
    #allocation6 [shape = 's32[1]{0}', space=sflag, size = 0x4, scoped, tag = 'scoped memory for tpu_custom_call.1']
    #allocation7 [shape = 'u8[65536]{0}', space=vmem, size = 0x10000, scoped, tag = 'input window, operand 3, single buffered']
    #allocation8 [shape = 'u8[8192]{0}', space=vmem, size = 0x2000, scoped, tag = 'output window, operand 0, single buffered']
    %12 = vsyncpa [#allocation3], 0
    %13 = vsyncpa [#allocation6], 0
    %14 = vsyncpa [#allocation4], 0
    // Predicated region
    $region2: #{tpu_custom_call.1} parent=1 // pred_check
      _
    $region3: #{tpu_custom_call.1} parent=1 // pred_check_branch
      %16 = sbr.rel (0) target = $region5
    $region4: #{tpu_custom_call.1} parent=1 // pred_region
      %s18 = ssub.s32 128, 128
      %19 = vsyncadd [#allocation3], %s18
      %s20 = sshll.u32 [#allocation2], 4
      %s21 = int_to_ptr.vmem [resolvable:$true] %s20
      %26 = dma.hbm_to_vmem [thread:$0]  %s0, 128, %s21, [#allocation3], 64, 64, 4
    $region5: #{tpu_custom_call.1} parent=1 // pred_fallthru
      _
    // Predicated region
    $region6: #{tpu_custom_call.1} parent=1 // pred_check
      _
    $region7: #{tpu_custom_call.1} parent=1 // pred_check_branch
      %28 = sbr.rel (0) target = $region9
    $region8: #{tpu_custom_call.1} parent=1 // pred_region
      %s30 = ssub.s32 256, 256
      %31 = vsyncadd [#allocation6], %s30
      %s32 = sshll.u32 [#allocation5], 4
      %s33 = int_to_ptr.vmem [resolvable:$true] %s32
      %38 = dma.hbm_to_vmem [thread:$0]  %s1, 256, %s33, [#allocation6], 128, 128, 8
    $region9: #{tpu_custom_call.1} parent=1 // pred_fallthru
      _
    // Predicated region
    $region10: #{tpu_custom_call.1} parent=1 // pred_check
      _
    $region11: #{tpu_custom_call.1} parent=1 // pred_check_branch
      %40 = sbr.rel (0) target = $region13
    $region12: #{tpu_custom_call.1} parent=1 // pred_region
      _
    $region13: #{tpu_custom_call.1} parent=1 // pred_fallthru
      _
    // Predicated region
    $region14: #{tpu_custom_call.1} parent=1 // pred_check
      _
    $region15: #{tpu_custom_call.1} parent=1 // pred_check_branch
      %42 = sbr.rel (0) target = $region17
    $region16: #{tpu_custom_call.1} parent=1 // pred_region
      %s44 = ssub.s32 2048, 2048
      %45 = vsyncadd [#allocation6], %s44
      %s46 = sshll.u32 [#allocation7], 4
      %s47 = int_to_ptr.vmem [resolvable:$true] %s46
      %52 = dma.hbm_to_vmem [thread:$0]  %s3, 2048, %s47, [#allocation6], 64, 64, 4
    $region17: #{tpu_custom_call.1} parent=1 // pred_fallthru
      _
    // Predicated region
    $region18: #{tpu_custom_call.1} parent=1 // pred_check
      _
    $region19: #{tpu_custom_call.1} parent=1 // pred_check_branch
      %54 = sbr.rel (0) target = $region21
    $region20: #{tpu_custom_call.1} parent=1 // pred_region
      _
    $region21: #{tpu_custom_call.1} parent=1 // pred_fallthru
      _
    // Predicated region
    $region22: #{tpu_custom_call.1} parent=1 // pred_check
      _
    $region23: #{tpu_custom_call.1} parent=1 // pred_check_branch
      %56 = sbr.rel (0) target = $region25
    $region24: #{tpu_custom_call.1} parent=1 // pred_region
      %57 = dma.done [#allocation3], 128
    $region25: #{tpu_custom_call.1} parent=1 // pred_fallthru
      _
    // Predicated region
    $region26: #{tpu_custom_call.1} parent=1 // pred_check
      _
    $region27: #{tpu_custom_call.1} parent=1 // pred_check_branch
      %59 = sbr.rel (0) target = $region29
    $region28: #{tpu_custom_call.1} parent=1 // pred_region
      %60 = dma.done [#allocation6], 256
    $region29: #{tpu_custom_call.1} parent=1 // pred_fallthru
      _
    // Predicated region
    $region30: #{tpu_custom_call.1} parent=1 // pred_check
      _
    $region31: #{tpu_custom_call.1} parent=1 // pred_check_branch
      %62 = sbr.rel (0) target = $region33
    $region32: #{tpu_custom_call.1} parent=1 // pred_region
      %63 = dma.done [#allocation6], 2048
    $region33: #{tpu_custom_call.1} parent=1 // pred_fallthru
      _
    %v65 = vld [vmem:[#allocation2] sm:$0xf]
    %v66 = vld [vmem:[#allocation2 + $0x4] sm:$0xf]
    %v67 = vld [vmem:[#allocation5] sm:$0xff]
    %v68 = vld [vmem:[#allocation5 + $0x8] sm:$0xff]
    %v69 = vld [vmem:[%s2] sm:$0x3]
    %v71 = vlaneseq
    %v72 = vshrl.u32 %v71, 7
    %v73 = vsub.s32 0, %v72
    %v74 = vrot.slane %v69, %v73
    %v75 = vlaneseq
    %v76 = vshrl.u32 %v75, 7
    %v77 = vsub.s32 1, %v76
    %v78 = vrot.slane %v69, %v77
    %v83 = vunpack.c.l.b16 %v65
    %v84 = vunpack.c.l.b16 %v66
    %v85 = vpack.c.b16 %v84, %v83
    %v88 = vunpack.c.l.b16 %v67
    %v89 = vunpack.c.h.b16 %v67
    %v90 = vunpack.c.l.b16 %v68
    %v91 = vunpack.c.h.b16 %v68
    %v92 = vpack.c.b16 %v90, %v88
    %v93 = vpack.c.b16 %v91, %v89
    %vm96 = vcmask 130048
    %v98 = vsel %vm96, %v85, 0
    %100 = vmatprep.subr.bf16.mxu0 0
    %101 = vmatpush1.bf16.msra.mxu0 0
    %102 = vmatprep.subr.bf16.mxu0 0
    %103 = vmatpush1.bf16.msra.mxu0 0
    %104 = vmatprep.subr.bf16.mxu0 0
    %105 = vmatpush1.bf16.msra.mxu0 0
    %106 = vmatprep.subr.bf16.mxu0 0
    %107 = vmatpush1.bf16.msra.mxu0 0
    %108 = vmatprep.subr.bf16.mxu0 0
    %109 = vmatpush1.bf16.msra.mxu0 0
    %110 = vmatprep.subr.bf16.mxu0 0
    %111 = vmatpush1.bf16.msra.mxu0 0
    %112 = vmatprep.subr.bf16.mxu0 0
    %113 = vmatpush1.bf16.msra.mxu0 0
    %114 = vmatprep.subr.bf16.mxu0 %v93
    %115 = vmatpush1.bf16.msra.mxu0 %v92
    %116 = vmatprep.subr.bf16.mxu0 0
    %117 = vmatpush2.bf16.msra.mxu0 0
    %118 = vmatprep.subr.bf16.mxu0 0
    %119 = vmatpush2.bf16.msra.mxu0 0
    %120 = vmatprep.subr.bf16.mxu0 0
    %121 = vmatpush2.bf16.msra.mxu0 0
    %122 = vmatprep.subr.bf16.mxu0 0
    %123 = vmatpush2.bf16.msra.mxu0 0
    %124 = vmatprep.subr.bf16.mxu0 0
    %125 = vmatpush2.bf16.msra.mxu0 0
    %126 = vmatprep.subr.bf16.mxu0 0
    %127 = vmatpush2.bf16.msra.mxu0 0
    %128 = vmatprep.subr.bf16.mxu0 0
    %129 = vmatpush2.bf16.msra.mxu0 0
    %130 = vmatprep.subr.bf16.mxu0 0
    %131 = vmatpush2.bf16.msra.mxu0 0
    %132 = vmatprep.mubr.bf16.mxu0 0
    %133 = vmatmul.mubr.bf16.gmra.mxu0 %v98
    %v134 = vpop.f32.mrf.mxu0
    %v135 = vadd.f32 %v74, %v134
    %v136 = vpop.f32.mrf.mxu0
    %v137 = vadd.f32 %v78, %v136
    %v138 = vpop.f32.mrf.mxu0
    %v139 = vadd.f32 %v74, %v138
    %v140 = vpop.f32.mrf.mxu0
    %v141 = vadd.f32 %v78, %v140
    %142 = vdwg.mxu0
    %v143 = vmax.f32 %v135, 0.0
    %v144 = vmax.f32 %v137, 0.0
    %v145 = vmax.f32 %v139, 0.0
    %v146 = vmax.f32 %v141, 0.0
    %v147 = vpack.c.bf16 %v145, %v143
    %v148 = vpack.c.bf16 %v146, %v144
    %v149 = vld [vmem:[#allocation7] sm:$0xf]
    %v150 = vld [vmem:[#allocation7 + $0x4] sm:$0xf]
    %v151 = vld [vmem:[#allocation7 + $0x8] sm:$0xf]
    %v152 = vld [vmem:[#allocation7 + $0xc] sm:$0xf]
    %v153 = vld [vmem:[#allocation7 + $0x10] sm:$0xf]
    %v154 = vld [vmem:[#allocation7 + $0x14] sm:$0xf]
    %v155 = vld [vmem:[#allocation7 + $0x18] sm:$0xf]
    %v156 = vld [vmem:[#allocation7 + $0x1c] sm:$0xf]
    %v157 = vld [vmem:[#allocation7 + $0x20] sm:$0xf]
    %v158 = vld [vmem:[#allocation7 + $0x24] sm:$0xf]
    %v159 = vld [vmem:[#allocation7 + $0x28] sm:$0xf]
    %v160 = vld [vmem:[#allocation7 + $0x2c] sm:$0xf]
    %v161 = vld [vmem:[#allocation7 + $0x30] sm:$0xf]
    %v162 = vld [vmem:[#allocation7 + $0x34] sm:$0xf]
    %v163 = vld [vmem:[#allocation7 + $0x38] sm:$0xf]
    %v164 = vld [vmem:[#allocation7 + $0x3c] sm:$0xf]
    %v165 = vld [vmem:[#allocation7 + $0x40] sm:$0xf]
    %v166 = vld [vmem:[#allocation7 + $0x44] sm:$0xf]
    %v167 = vld [vmem:[#allocation7 + $0x48] sm:$0xf]
    %v168 = vld [vmem:[#allocation7 + $0x4c] sm:$0xf]
    %v169 = vld [vmem:[#allocation7 + $0x50] sm:$0xf]
    %v170 = vld [vmem:[#allocation7 + $0x54] sm:$0xf]
    %v171 = vld [vmem:[#allocation7 + $0x58] sm:$0xf]
    %v172 = vld [vmem:[#allocation7 + $0x5c] sm:$0xf]
    %v173 = vld [vmem:[#allocation7 + $0x60] sm:$0xf]
    %v174 = vld [vmem:[#allocation7 + $0x64] sm:$0xf]
    %v175 = vld [vmem:[#allocation7 + $0x68] sm:$0xf]
    %v176 = vld [vmem:[#allocation7 + $0x6c] sm:$0xf]
    %v177 = vld [vmem:[#allocation7 + $0x70] sm:$0xf]
    %v178 = vld [vmem:[#allocation7 + $0x74] sm:$0xf]
    %v179 = vld [vmem:[#allocation7 + $0x78] sm:$0xf]
    %v180 = vld [vmem:[#allocation7 + $0x7c] sm:$0xf]
    %v181 = vld [vmem:[%s4] sm:$0x1]
    %v183 = vlaneseq
    %v184 = vshrl.u32 %v183, 7
    %v185 = vsub.s32 0, %v184
    %v186 = vrot.slane %v181, %v185
    %v220 = vunpack.c.l.b16 %v149
    %v221 = vunpack.c.l.b16 %v150
    %v222 = vunpack.c.l.b16 %v151
    %v223 = vunpack.c.l.b16 %v152
    %v224 = vunpack.c.l.b16 %v153
    %v225 = vunpack.c.l.b16 %v154
    %v226 = vunpack.c.l.b16 %v155
    %v227 = vunpack.c.l.b16 %v156
    %v228 = vunpack.c.l.b16 %v157
    %v229 = vunpack.c.l.b16 %v158
    %v230 = vunpack.c.l.b16 %v159
    %v231 = vunpack.c.l.b16 %v160
    %v232 = vunpack.c.l.b16 %v161
    %v233 = vunpack.c.l.b16 %v162
    %v234 = vunpack.c.l.b16 %v163
    %v235 = vunpack.c.l.b16 %v164
    %v236 = vunpack.c.l.b16 %v165
    %v237 = vunpack.c.l.b16 %v166
    %v238 = vunpack.c.l.b16 %v167
    %v239 = vunpack.c.l.b16 %v168
    %v240 = vunpack.c.l.b16 %v169
    %v241 = vunpack.c.l.b16 %v170
    %v242 = vunpack.c.l.b16 %v171
    %v243 = vunpack.c.l.b16 %v172
    %v244 = vunpack.c.l.b16 %v173
    %v245 = vunpack.c.l.b16 %v174
    %v246 = vunpack.c.l.b16 %v175
    %v247 = vunpack.c.l.b16 %v176
    %v248 = vunpack.c.l.b16 %v177
    %v249 = vunpack.c.l.b16 %v178
    %v250 = vunpack.c.l.b16 %v179
    %v251 = vunpack.c.l.b16 %v180
    %v252 = vpack.c.b16 %v221, %v220
    %v253 = vpack.c.b16 %v223, %v222
    %v254 = vpack.c.b16 %v225, %v224
    %v255 = vpack.c.b16 %v227, %v226
    %v256 = vpack.c.b16 %v229, %v228
    %v257 = vpack.c.b16 %v231, %v230
    %v258 = vpack.c.b16 %v233, %v232
    %v259 = vpack.c.b16 %v235, %v234
    %v260 = vpack.c.b16 %v237, %v236
    %v261 = vpack.c.b16 %v239, %v238
    %v262 = vpack.c.b16 %v241, %v240
    %v263 = vpack.c.b16 %v243, %v242
    %v264 = vpack.c.b16 %v245, %v244
    %v265 = vpack.c.b16 %v247, %v246
    %v266 = vpack.c.b16 %v249, %v248
    %v267 = vpack.c.b16 %v251, %v250
    %284 = vmatprep.subr.bf16.mxu0 0
    %285 = vmatpush1.bf16.msra.mxu0 %v259
    %286 = vmatprep.subr.bf16.mxu0 0
    %287 = vmatpush1.bf16.msra.mxu0 %v258
    %288 = vmatprep.subr.bf16.mxu0 0
    %289 = vmatpush1.bf16.msra.mxu0 %v257
    %290 = vmatprep.subr.bf16.mxu0 0
    %291 = vmatpush1.bf16.msra.mxu0 %v256
    %292 = vmatprep.subr.bf16.mxu0 0
    %293 = vmatpush1.bf16.msra.mxu0 %v255
    %294 = vmatprep.subr.bf16.mxu0 0
    %295 = vmatpush1.bf16.msra.mxu0 %v254
    %296 = vmatprep.subr.bf16.mxu0 0
    %297 = vmatpush1.bf16.msra.mxu0 %v253
    %298 = vmatprep.subr.bf16.mxu0 0
    %299 = vmatpush1.bf16.msra.mxu0 %v252
    %300 = vmatprep.subr.bf16.mxu0 0
    %301 = vmatpush2.bf16.msra.mxu0 %v267
    %302 = vmatprep.subr.bf16.mxu0 0
    %303 = vmatpush2.bf16.msra.mxu0 %v266
    %304 = vmatprep.subr.bf16.mxu0 0
    %305 = vmatpush2.bf16.msra.mxu0 %v265
    %306 = vmatprep.subr.bf16.mxu0 0
    %307 = vmatpush2.bf16.msra.mxu0 %v264
    %308 = vmatprep.subr.bf16.mxu0 0
    %309 = vmatpush2.bf16.msra.mxu0 %v263
    %310 = vmatprep.subr.bf16.mxu0 0
    %311 = vmatpush2.bf16.msra.mxu0 %v262
    %312 = vmatprep.subr.bf16.mxu0 0
    %313 = vmatpush2.bf16.msra.mxu0 %v261
    %314 = vmatprep.subr.bf16.mxu0 0
    %315 = vmatpush2.bf16.msra.mxu0 %v260
    %316 = vmatprep.mubr.bf16.mxu0 %v148
    %317 = vmatmul.mubr.bf16.gmra.mxu0 %v147
    %v318 = vpop.f32.mrf.mxu0
    %v319 = vadd.f32 %v186, %v318
    %v320 = vpop.f32.mrf.mxu0
    %v321 = vpop.f32.mrf.mxu0
    %v322 = vadd.f32 %v186, %v321
    %v323 = vpop.f32.mrf.mxu0
    %324 = vdwg.mxu0
    %325 = vst [vmem:[#allocation8] sm:$0xff] %v319
    %326 = vst [vmem:[#allocation8 + $0x8] sm:$0xff] %v322
    %v327 = vlaneseq
    %v328 = vand.u32 %v327, 127
    %vm329 = vcmp.lt.s32.totalorder %v328, 4
    %v330 = vsel %vm329, %v319, -inf
    %v331 = vsel %vm329, %v322, -inf
    %332 = vmax.xlane.f32.xlu0 %v330
    %v333 = vpop.xlane.xlu0 %332
    %334 = vmax.xlane.f32.xlu0 %v331
    %v335 = vpop.xlane.xlu0 %334
    %vm336 = vcmp.eq.f32.partialorder %v330, %v333
    %vm337 = vcmp.eq.f32.partialorder %v331, %v335
    %vm338 = vmand %vm336, %vm329
    %vm339 = vmand %vm337, %vm329
    %v340 = vsel %vm338, %v328, 128
    %v341 = vsel %vm339, %v328, 128
    %v342 = vand.u32 %v340, 65535
    %v343 = vshra.s32 %v340, 16
    %v344 = vcvt.s32.f32 %v342
    %v345 = vcvt.s32.f32 %v343
    %346 = vmin.xlane.f32.xlu0 %v345
    %v347 = vpop.xlane.xlu0 %346
    %vm348 = vcmp.eq.f32.partialorder %v345, %v347
    %v349 = vsel %vm348, %v344, inf
    %350 = vmin.xlane.f32.xlu0 %v349
    %v351 = vpop.xlane.xlu0 %350
    %v352 = vcvt.f32.s32 %v351
    %v353 = vcvt.f32.s32 %v347
    %v354 = vshll.u32 %v353, 16
    %v355 = vadd.s32 %v354, %v352
    %v356 = vand.u32 %v341, 65535
    %v357 = vshra.s32 %v341, 16
    %v358 = vcvt.s32.f32 %v356
    %v359 = vcvt.s32.f32 %v357
    %360 = vmin.xlane.f32.xlu0 %v359
    %v361 = vpop.xlane.xlu0 %360
    %vm362 = vcmp.eq.f32.partialorder %v359, %v361
    %v363 = vsel %vm362, %v358, inf
    %364 = vmin.xlane.f32.xlu0 %v363
    %v365 = vpop.xlane.xlu0 %364
    %v366 = vcvt.f32.s32 %v365
    %v367 = vcvt.f32.s32 %v361
    %v368 = vshll.u32 %v367, 16
    %v369 = vadd.s32 %v368, %v366
    %vm370 = vcmask 7168
    %371 = vst.msk [vmem:[%s6] sm:$0xff] %vm370, %v355
    %372 = vst.msk [vmem:[%s6 + $0x8] sm:$0xff] %vm370, %v369
    // Predicated region
    $region34: #{tpu_custom_call.1} parent=1 // pred_check
      _
    $region35: #{tpu_custom_call.1} parent=1 // pred_check_branch
      %374 = sbr.rel (0) target = $region37
    $region36: #{tpu_custom_call.1} parent=1 // pred_region
      %s376 = ssub.s32 256, 256
      %377 = vsyncadd [#allocation4], %s376
      %s378 = sshll.u32 [#allocation8], 4
      %s379 = int_to_ptr.vmem [resolvable:$true] %s378
      %384 = dma.vmem_to_hbm [thread:$0]  %s379, 256, %s5, [#allocation4], 128, 128, 8
    $region37: #{tpu_custom_call.1} parent=1 // pred_fallthru
      _
    // Predicated region
    $region38: #{tpu_custom_call.1} parent=1 // pred_check
      _
    $region39: #{tpu_custom_call.1} parent=1 // pred_check_branch
      %386 = sbr.rel (0) target = $region41
    $region40: #{tpu_custom_call.1} parent=1 // pred_region
      _
    $region41: #{tpu_custom_call.1} parent=1 // pred_fallthru
      _
    // Predicated region
    $region42: #{tpu_custom_call.1} parent=1 // pred_check
      _
    $region43: #{tpu_custom_call.1} parent=1 // pred_check_branch
      %388 = sbr.rel (0) target = $region45
    $region44: #{tpu_custom_call.1} parent=1 // pred_region
      %389 = dma.done [#allocation4], 256
    $region45: #{tpu_custom_call.1} parent=1 // pred_fallthru
      _
    // Predicated region
    $region46: #{tpu_custom_call.1} parent=1 // pred_check
      _
    $region47: #{tpu_custom_call.1} parent=1 // pred_check_branch
      %391 = sbr.rel (0) target = $region49
    $region48: #{tpu_custom_call.1} parent=1 // pred_region
      _
    $region49: #{tpu_custom_call.1} parent=1 // pred_fallthru
      _
    %392 = vsyncpa [#allocation3], 1
    %393 = vsyncpa [#allocation6], 1
    %394 = vsyncpa [#allocation4], 1

</llo_original>
